<compile_context>
chip_gen: v7x
topology: tpu7x:2x2x1
jax: 0.10.0
libtpu: 0.0.40
codegen_flags: <defaults>
</compile_context>

<pallas_src>
import math

import jax
import jax.numpy as jnp
from jax import lax
from jax.experimental import pallas as pl
from jax.experimental.pallas import tpu as pltpu

# Scaled-down shapes (original: hid=768, decoder=256, seq<=20, answers~1842).
HID = 32            # hid_dim
DEC = 16            # HIDDEN_DECODER_SIZE
NUM_ANSWERS = 16
B, L, N = 2, 8, 8   # batch, language tokens, visual objects
EPS = 1e-12         # BertLayerNorm eps
INV_SQRT_DEC = 1.0 / math.sqrt(DEC)

# Packing relies on these equalities at the toy scale (out dim of all W2 = 16,
# and the fused SDP slab width B*N equals NUM_ANSWERS).
assert DEC == NUM_ANSWERS == B * N


# ----------------------------- in-kernel math ------------------------------
def _gelu(x):
    # LXMERT GeLU: x * 0.5 * (1 + erf(x / sqrt(2)))   (exact erf kept)
    return x * 0.5 * (1.0 + lax.erf(x / math.sqrt(2.0)))


def _layernorm(x, gamma, beta):
    # BertLayerNorm over last axis (biased variance), eps=1e-12
    u = jnp.mean(x, axis=-1, keepdims=True)
    s = jnp.mean((x - u) ** 2, axis=-1, keepdims=True)
    return gamma * (x - u) * lax.rsqrt(s + EPS) + beta


# ------------------------------- fused kernel --------------------------------
def gqa_fused_kernel(act_ref, w1_ref, lnb_ref, w2_ref, out_ref):
    # act rows: [0:B] = pooled x, [B:B+B*L] = lang tokens, [B+B*L:] = vis objs
    acts = act_ref[...]                         # (B + B*L + B*N, HID)
    x = acts[0:B, :]
    lang = acts[B:B + B * L, :]
    vis = acts[B + B * L:, :]

    def mlp(t, idx):
        # Linear -> GeLU -> BertLayerNorm -> Linear (shared structure).
        # lnb rows: 0 = first-linear bias, 1 = LN gamma, 2 = LN beta,
        #           3 = second-linear bias (padded to 2*HID lanes).
        w1 = w1_ref[idx]                        # (HID, 2*HID)
        lnb = lnb_ref[idx]                      # (4, 2*HID)
        w2 = w2_ref[idx]                        # (2*HID, 16)
        h = jnp.dot(t, w1, preferred_element_type=jnp.float32) + lnb[0:1, :]
        h = _gelu(h)
        h = _layernorm(h, lnb[1:2, :], lnb[2:3, :])
        return jnp.dot(h, w2, preferred_element_type=jnp.float32) + lnb[3:4, 0:16]

    # ---- logit_fc + softmax -------------------------------------------------
    logits = mlp(x, 0)                          # (B, NUM_ANSWERS)
    m = jnp.max(logits, axis=-1, keepdims=True)
    e = jnp.exp(logits - m)
    inv_denom = pl.reciprocal(jnp.sum(e, axis=-1, keepdims=True), approx=True)
    probs = e * inv_denom                       # (B, NUM_ANSWERS)

    # ---- MatchingDecoderLV (metric='sdp') -----------------------------------
    lp = mlp(lang, 1) * INV_SQRT_DEC            # (B*L, DEC), 1/sqrt(D) folded
    vp = mlp(vis, 2)                            # (B*N, DEC)
    # One dot over the folded batch: full (B*L, B*N) product; the wrapper
    # extracts the per-batch diagonal (L, N) blocks.
    full = lax.dot_general(lp, vp, (((1,), (1,)), ((), ())),
                           preferred_element_type=jnp.float32)  # (B*L, B*N)

    out_ref[0:B * L, :] = full
    out_ref[B * L:B * L + B, :] = probs


# ------------------------------ wrapper --------------------------------------
def _cost_estimate():
    h2 = 2 * HID
    rows = B + B * L + B * N
    flops = (
        2 * rows * HID * h2 + 2 * rows * h2 * 16      # shared-MLP matmuls
        + 2 * (B * L) * (B * N) * DEC                 # fused SDP
    )
    transcendentals = (
        rows * h2                                     # GeLU erf
        + B * NUM_ANSWERS + B                         # softmax exp + vrcp
        + rows                                        # LN rsqrt (approx count)
    )
    bytes_accessed = 4 * (
        rows * HID                                    # activation slab
        + 3 * (HID * h2 + 4 * h2 + h2 * 16)           # packed params
        + (B * L + B) * 16                            # output slab
    )
    return pl.CostEstimate(flops=int(flops),
                           transcendentals=int(transcendentals),
                           bytes_accessed=int(bytes_accessed))


def gqa_forward(x, lang_feat, vis_feat, p):
    """Mirrors GQAModel.forward (non-verbose) given encoder outputs."""
    # Single activation slab: [x ; lang ; vis]  -> one input DMA.
    acts = jnp.concatenate(
        [x, lang_feat.reshape(B * L, HID), vis_feat.reshape(B * N, HID)],
        axis=0)                                        # (B + B*L + B*N, HID)

    vmem = pl.BlockSpec(memory_space=pltpu.MemorySpace.VMEM)
    out = pl.pallas_call(
        gqa_fused_kernel,
        out_shape=jax.ShapeDtypeStruct((B * L + B, 16), jnp.float32),
        in_specs=[vmem] * 4,
        out_specs=vmem,
        cost_estimate=_cost_estimate(),
    )(acts, p["w1"], p["lnb"], p["w2"])

    probs = out[B * L:B * L + B, :]                    # (B, NUM_ANSWERS)
    full = out[0:B * L, :]                             # (B*L, B*N)
    iou_pred = jnp.stack(
        [full[b * L:(b + 1) * L, b * N:(b + 1) * N] for b in range(B)])  # (B,L,N)

    # TODO(synk): iou_target comes from the LXRT encoder (not implemented).
    iou_target = None
    return probs, iou_target, iou_pred


# --------------------------- parameter init ----------------------------------
def init_params(key):
    ks = jax.random.split(key, 18)

    def lin(k, din, dout):
        return jax.random.normal(k, (din, dout), jnp.float32) * 0.02

    def block(k6, din, dhid, dout):
        kw1, kw2, kb1, kg, kbt, kb2 = k6
        b2 = jax.random.normal(kb2, (dout,), jnp.float32) * 0.02
        lnb = jnp.stack([
            jax.random.normal(kb1, (dhid,), jnp.float32) * 0.02,      # bias1
            1.0 + jax.random.normal(kg, (dhid,), jnp.float32) * 0.02,  # gamma
            jax.random.normal(kbt, (dhid,), jnp.float32) * 0.02,      # beta
            jnp.pad(b2, (0, dhid - dout)),                            # bias2
        ])
        return lin(kw1, din, dhid), lnb, lin(kw2, dhid, dout)

    hw1, hln, hw2 = block(ks[0:6], HID, 2 * HID, NUM_ANSWERS)   # logit_fc
    lw1, lln, lw2 = block(ks[6:12], HID, 2 * HID, DEC)          # lang_proj
    vw1, vln, vw2 = block(ks[12:18], HID, 2 * HID, DEC)         # vis_proj

    return {
        "w1": jnp.stack([hw1, lw1, vw1]),     # (3, HID, 2*HID)
        "lnb": jnp.stack([hln, lln, vln]),    # (3, 4, 2*HID)
        "w2": jnp.stack([hw2, lw2, vw2]),     # (3, 2*HID, 16)
    }


# ----------------------------- reference (pure JAX) ---------------------------
def _ref_forward(x, lang, vis, p):
    def mlp(t, idx):
        w1, lnb, w2 = p["w1"][idx], p["lnb"][idx], p["w2"][idx]
        h = t @ w1 + lnb[0]
        h = _gelu(h)
        u = h.mean(-1, keepdims=True)
        s = ((h - u) ** 2).mean(-1, keepdims=True)
        h = lnb[1] * (h - u) / jnp.sqrt(s + EPS) + lnb[2]
        return h @ w2 + lnb[3][0:16]

    logits = mlp(x, 0)
    probs = jax.nn.softmax(logits, axis=-1)
    lp = mlp(lang, 1)
    vp = mlp(vis, 2)
    match = jnp.einsum("bld,bnd->bln", lp, vp) / math.sqrt(DEC)
    return probs, match


if __name__ == "__main__":
    key = jax.random.PRNGKey(0)
    k_p, k_x, k_l, k_v = jax.random.split(key, 4)

    params = init_params(k_p)

    # TODO(synk): LXRT encoder outputs synthesized deterministically here.
    x = jax.random.normal(k_x, (B, HID), jnp.float32)            # pooled CLS
    lang_feat = jax.random.normal(k_l, (B, L, HID), jnp.float32)
    vis_feat = jax.random.normal(k_v, (B, N, HID), jnp.float32)

    logit, iou_target, iou_pred = gqa_forward(x, lang_feat, vis_feat, params)
    jax.block_until_ready((logit, iou_pred))

    ref_logit, ref_match = _ref_forward(x, lang_feat, vis_feat, params)
    # probs tolerance relaxed slightly: softmax denom uses EUP approx reciprocal
    assert jnp.allclose(logit, ref_logit, atol=2e-3, rtol=2e-3)
    assert jnp.allclose(iou_pred, ref_match, atol=1e-5, rtol=1e-5)
    assert logit.shape == (B, NUM_ANSWERS) and iou_pred.shape == (B, L, N)

    print("KERNEL_OK")
</pallas_src>

<mosaic_0001>
module attributes {stable_mosaic.version = 11 : i64} {
  func.func @gqa_fused_kernel(%arg0: memref<34x32xf32, #tpu.memory_space<vmem>>, %arg1: memref<3x32x64xf32, #tpu.memory_space<vmem>>, %arg2: memref<3x4x64xf32, #tpu.memory_space<vmem>>, %arg3: memref<3x64x16xf32, #tpu.memory_space<vmem>>, %arg4: memref<18x16xf32, #tpu.memory_space<vmem>>) attributes {dimension_semantics = [], scalar_prefetch = 0 : i64, scratch_operands = 0 : i64, tpu.core_type = #tpu.core_type<tc>} {
    %c0 = arith.constant 0 : index
    %c0_0 = arith.constant 0 : index
    %0 = vector.load %arg0[%c0, %c0_0] : memref<34x32xf32, #tpu.memory_space<vmem>>, vector<34x32xf32>
    %1 = vector.extract_strided_slice %0 {offsets = [0, 0], sizes = [2, 32], strides = [1, 1]} : vector<34x32xf32> to vector<2x32xf32>
    %2 = vector.extract_strided_slice %0 {offsets = [2, 0], sizes = [16, 32], strides = [1, 1]} : vector<34x32xf32> to vector<16x32xf32>
    %3 = vector.extract_strided_slice %0 {offsets = [18, 0], sizes = [16, 32], strides = [1, 1]} : vector<34x32xf32> to vector<16x32xf32>
    %c0_1 = arith.constant 0 : index
    %c0_2 = arith.constant 0 : index
    %c0_3 = arith.constant 0 : index
    %4 = vector.load %arg1[%c0_1, %c0_2, %c0_3] : memref<3x32x64xf32, #tpu.memory_space<vmem>>, vector<1x32x64xf32>
    %5 = vector.shape_cast %4 : vector<1x32x64xf32> to vector<32x64xf32>
    %c0_4 = arith.constant 0 : index
    %c0_5 = arith.constant 0 : index
    %c0_6 = arith.constant 0 : index
    %6 = vector.load %arg2[%c0_4, %c0_5, %c0_6] : memref<3x4x64xf32, #tpu.memory_space<vmem>>, vector<1x4x64xf32>
    %7 = vector.shape_cast %6 : vector<1x4x64xf32> to vector<4x64xf32>
    %c0_7 = arith.constant 0 : index
    %c0_8 = arith.constant 0 : index
    %c0_9 = arith.constant 0 : index
    %8 = vector.load %arg3[%c0_7, %c0_8, %c0_9] : memref<3x64x16xf32, #tpu.memory_space<vmem>>, vector<1x64x16xf32>
    %9 = vector.shape_cast %8 : vector<1x64x16xf32> to vector<64x16xf32>
    %cst = arith.constant dense<0.000000e+00> : vector<2x64xf32>
    %10 = tpu.matmul %1, %5, %cst {dimension_numbers = #tpu.dot_dimension_numbers<[1], [0], [0], [1], [0, 0, 1, 1], [], []>} : vector<2x32xf32>, vector<32x64xf32>, vector<2x64xf32> -> vector<2x64xf32>
    %11 = vector.extract_strided_slice %7 {offsets = [0, 0], sizes = [1, 64], strides = [1, 1]} : vector<4x64xf32> to vector<1x64xf32>
    %12 = vector.broadcast %11 : vector<1x64xf32> to vector<2x64xf32>
    %13 = arith.addf %10, %12 : vector<2x64xf32>
    %cst_10 = arith.constant 5.000000e-01 : f32
    %14 = vector.broadcast %cst_10 : f32 to vector<2x64xf32>
    %15 = arith.mulf %13, %14 : vector<2x64xf32>
    %cst_11 = arith.constant 1.41421354 : f32
    %16 = vector.broadcast %cst_11 : f32 to vector<2x64xf32>
    %17 = arith.divf %13, %16 : vector<2x64xf32>
    %18 = math.erf %17 : vector<2x64xf32>
    %cst_12 = arith.constant 1.000000e+00 : f32
    %19 = vector.broadcast %cst_12 : f32 to vector<2x64xf32>
    %20 = arith.addf %19, %18 : vector<2x64xf32>
    %21 = arith.mulf %15, %20 : vector<2x64xf32>
    %22 = vector.extract_strided_slice %7 {offsets = [1, 0], sizes = [1, 64], strides = [1, 1]} : vector<4x64xf32> to vector<1x64xf32>
    %23 = vector.extract_strided_slice %7 {offsets = [2, 0], sizes = [1, 64], strides = [1, 1]} : vector<4x64xf32> to vector<1x64xf32>
    %cst_13 = arith.constant dense<0.000000e+00> : vector<2xf32>
    %24 = vector.multi_reduction <add>, %21, %cst_13 [1] : vector<2x64xf32> to vector<2xf32>
    %25 = vector.shape_cast %24 : vector<2xf32> to vector<2x1xf32>
    %cst_14 = arith.constant 6.400000e+01 : f32
    %26 = vector.broadcast %cst_14 : f32 to vector<2x1xf32>
    %27 = arith.divf %25, %26 : vector<2x1xf32>
    %28 = vector.broadcast %27 : vector<2x1xf32> to vector<2x64xf32>
    %29 = arith.subf %21, %28 : vector<2x64xf32>
    %30 = arith.mulf %29, %29 : vector<2x64xf32>
    %cst_15 = arith.constant dense<0.000000e+00> : vector<2xf32>
    %31 = vector.multi_reduction <add>, %30, %cst_15 [1] : vector<2x64xf32> to vector<2xf32>
    %32 = vector.shape_cast %31 : vector<2xf32> to vector<2x1xf32>
    %cst_16 = arith.constant 6.400000e+01 : f32
    %33 = vector.broadcast %cst_16 : f32 to vector<2x1xf32>
    %34 = arith.divf %32, %33 : vector<2x1xf32>
    %35 = vector.broadcast %27 : vector<2x1xf32> to vector<2x64xf32>
    %36 = arith.subf %21, %35 : vector<2x64xf32>
    %37 = vector.broadcast %22 : vector<1x64xf32> to vector<2x64xf32>
    %38 = arith.mulf %37, %36 : vector<2x64xf32>
    %cst_17 = arith.constant 9.99999996E-13 : f32
    %39 = vector.broadcast %cst_17 : f32 to vector<2x1xf32>
    %40 = arith.addf %34, %39 : vector<2x1xf32>
    %41 = math.rsqrt %40 : vector<2x1xf32>
    %42 = vector.broadcast %41 : vector<2x1xf32> to vector<2x64xf32>
    %43 = arith.mulf %38, %42 : vector<2x64xf32>
    %44 = vector.broadcast %23 : vector<1x64xf32> to vector<2x64xf32>
    %45 = arith.addf %43, %44 : vector<2x64xf32>
    %cst_18 = arith.constant dense<0.000000e+00> : vector<2x16xf32>
    %46 = tpu.matmul %45, %9, %cst_18 {dimension_numbers = #tpu.dot_dimension_numbers<[1], [0], [0], [1], [0, 0, 1, 1], [], []>} : vector<2x64xf32>, vector<64x16xf32>, vector<2x16xf32> -> vector<2x16xf32>
    %47 = vector.extract_strided_slice %7 {offsets = [3, 0], sizes = [1, 16], strides = [1, 1]} : vector<4x64xf32> to vector<1x16xf32>
    %48 = vector.broadcast %47 : vector<1x16xf32> to vector<2x16xf32>
    %49 = arith.addf %46, %48 : vector<2x16xf32>
    %cst_19 = arith.constant dense<0xFF800000> : vector<2xf32>
    %50 = vector.multi_reduction <maximumf>, %49, %cst_19 [1] : vector<2x16xf32> to vector<2xf32>
    %51 = vector.shape_cast %50 : vector<2xf32> to vector<2x1xf32>
    %52 = vector.broadcast %51 : vector<2x1xf32> to vector<2x16xf32>
    %53 = arith.subf %49, %52 : vector<2x16xf32>
    %54 = math.exp %53 : vector<2x16xf32>
    %cst_20 = arith.constant dense<0.000000e+00> : vector<2xf32>
    %55 = vector.multi_reduction <add>, %54, %cst_20 [1] : vector<2x16xf32> to vector<2xf32>
    %56 = vector.shape_cast %55 : vector<2xf32> to vector<2x1xf32>
    %57 = tpu.reciprocal %56 {approx = true} : vector<2x1xf32> -> vector<2x1xf32>
    %58 = vector.broadcast %57 : vector<2x1xf32> to vector<2x16xf32>
    %59 = arith.mulf %54, %58 : vector<2x16xf32>
    %c1 = arith.constant 1 : index
    %c0_21 = arith.constant 0 : index
    %c0_22 = arith.constant 0 : index
    %60 = vector.load %arg1[%c1, %c0_21, %c0_22] : memref<3x32x64xf32, #tpu.memory_space<vmem>>, vector<1x32x64xf32>
    %61 = vector.shape_cast %60 : vector<1x32x64xf32> to vector<32x64xf32>
    %c1_23 = arith.constant 1 : index
    %c0_24 = arith.constant 0 : index
    %c0_25 = arith.constant 0 : index
    %62 = vector.load %arg2[%c1_23, %c0_24, %c0_25] : memref<3x4x64xf32, #tpu.memory_space<vmem>>, vector<1x4x64xf32>
    %63 = vector.shape_cast %62 : vector<1x4x64xf32> to vector<4x64xf32>
    %c1_26 = arith.constant 1 : index
    %c0_27 = arith.constant 0 : index
    %c0_28 = arith.constant 0 : index
    %64 = vector.load %arg3[%c1_26, %c0_27, %c0_28] : memref<3x64x16xf32, #tpu.memory_space<vmem>>, vector<1x64x16xf32>
    %65 = vector.shape_cast %64 : vector<1x64x16xf32> to vector<64x16xf32>
    %cst_29 = arith.constant dense<0.000000e+00> : vector<16x64xf32>
    %66 = tpu.matmul %2, %61, %cst_29 {dimension_numbers = #tpu.dot_dimension_numbers<[1], [0], [0], [1], [0, 0, 1, 1], [], []>} : vector<16x32xf32>, vector<32x64xf32>, vector<16x64xf32> -> vector<16x64xf32>
    %67 = vector.extract_strided_slice %63 {offsets = [0, 0], sizes = [1, 64], strides = [1, 1]} : vector<4x64xf32> to vector<1x64xf32>
    %68 = vector.broadcast %67 : vector<1x64xf32> to vector<16x64xf32>
    %69 = arith.addf %66, %68 : vector<16x64xf32>
    %cst_30 = arith.constant 5.000000e-01 : f32
    %70 = vector.broadcast %cst_30 : f32 to vector<16x64xf32>
    %71 = arith.mulf %69, %70 : vector<16x64xf32>
    %cst_31 = arith.constant 1.41421354 : f32
    %72 = vector.broadcast %cst_31 : f32 to vector<16x64xf32>
    %73 = arith.divf %69, %72 : vector<16x64xf32>
    %74 = math.erf %73 : vector<16x64xf32>
    %cst_32 = arith.constant 1.000000e+00 : f32
    %75 = vector.broadcast %cst_32 : f32 to vector<16x64xf32>
    %76 = arith.addf %75, %74 : vector<16x64xf32>
    %77 = arith.mulf %71, %76 : vector<16x64xf32>
    %78 = vector.extract_strided_slice %63 {offsets = [1, 0], sizes = [1, 64], strides = [1, 1]} : vector<4x64xf32> to vector<1x64xf32>
    %79 = vector.extract_strided_slice %63 {offsets = [2, 0], sizes = [1, 64], strides = [1, 1]} : vector<4x64xf32> to vector<1x64xf32>
    %cst_33 = arith.constant dense<0.000000e+00> : vector<16xf32>
    %80 = vector.multi_reduction <add>, %77, %cst_33 [1] : vector<16x64xf32> to vector<16xf32>
    %81 = vector.shape_cast %80 : vector<16xf32> to vector<16x1xf32>
    %cst_34 = arith.constant 6.400000e+01 : f32
    %82 = vector.broadcast %cst_34 : f32 to vector<16x1xf32>
    %83 = arith.divf %81, %82 : vector<16x1xf32>
    %84 = vector.broadcast %83 : vector<16x1xf32> to vector<16x64xf32>
    %85 = arith.subf %77, %84 : vector<16x64xf32>
    %86 = arith.mulf %85, %85 : vector<16x64xf32>
    %cst_35 = arith.constant dense<0.000000e+00> : vector<16xf32>
    %87 = vector.multi_reduction <add>, %86, %cst_35 [1] : vector<16x64xf32> to vector<16xf32>
    %88 = vector.shape_cast %87 : vector<16xf32> to vector<16x1xf32>
    %cst_36 = arith.constant 6.400000e+01 : f32
    %89 = vector.broadcast %cst_36 : f32 to vector<16x1xf32>
    %90 = arith.divf %88, %89 : vector<16x1xf32>
    %91 = vector.broadcast %83 : vector<16x1xf32> to vector<16x64xf32>
    %92 = arith.subf %77, %91 : vector<16x64xf32>
    %93 = vector.broadcast %78 : vector<1x64xf32> to vector<16x64xf32>
    %94 = arith.mulf %93, %92 : vector<16x64xf32>
    %cst_37 = arith.constant 9.99999996E-13 : f32
    %95 = vector.broadcast %cst_37 : f32 to vector<16x1xf32>
    %96 = arith.addf %90, %95 : vector<16x1xf32>
    %97 = math.rsqrt %96 : vector<16x1xf32>
    %98 = vector.broadcast %97 : vector<16x1xf32> to vector<16x64xf32>
    %99 = arith.mulf %94, %98 : vector<16x64xf32>
    %100 = vector.broadcast %79 : vector<1x64xf32> to vector<16x64xf32>
    %101 = arith.addf %99, %100 : vector<16x64xf32>
    %cst_38 = arith.constant dense<0.000000e+00> : vector<16x16xf32>
    %102 = tpu.matmul %101, %65, %cst_38 {dimension_numbers = #tpu.dot_dimension_numbers<[1], [0], [0], [1], [0, 0, 1, 1], [], []>} : vector<16x64xf32>, vector<64x16xf32>, vector<16x16xf32> -> vector<16x16xf32>
    %103 = vector.extract_strided_slice %63 {offsets = [3, 0], sizes = [1, 16], strides = [1, 1]} : vector<4x64xf32> to vector<1x16xf32>
    %104 = vector.broadcast %103 : vector<1x16xf32> to vector<16x16xf32>
    %105 = arith.addf %102, %104 : vector<16x16xf32>
    %cst_39 = arith.constant 2.500000e-01 : f32
    %106 = vector.broadcast %cst_39 : f32 to vector<16x16xf32>
    %107 = arith.mulf %105, %106 : vector<16x16xf32>
    %c2 = arith.constant 2 : index
    %c0_40 = arith.constant 0 : index
    %c0_41 = arith.constant 0 : index
    %108 = vector.load %arg1[%c2, %c0_40, %c0_41] : memref<3x32x64xf32, #tpu.memory_space<vmem>>, vector<1x32x64xf32>
    %109 = vector.shape_cast %108 : vector<1x32x64xf32> to vector<32x64xf32>
    %c2_42 = arith.constant 2 : index
    %c0_43 = arith.constant 0 : index
    %c0_44 = arith.constant 0 : index
    %110 = vector.load %arg2[%c2_42, %c0_43, %c0_44] : memref<3x4x64xf32, #tpu.memory_space<vmem>>, vector<1x4x64xf32>
    %111 = vector.shape_cast %110 : vector<1x4x64xf32> to vector<4x64xf32>
    %c2_45 = arith.constant 2 : index
    %c0_46 = arith.constant 0 : index
    %c0_47 = arith.constant 0 : index
    %112 = vector.load %arg3[%c2_45, %c0_46, %c0_47] : memref<3x64x16xf32, #tpu.memory_space<vmem>>, vector<1x64x16xf32>
    %113 = vector.shape_cast %112 : vector<1x64x16xf32> to vector<64x16xf32>
    %cst_48 = arith.constant dense<0.000000e+00> : vector<16x64xf32>
    %114 = tpu.matmul %3, %109, %cst_48 {dimension_numbers = #tpu.dot_dimension_numbers<[1], [0], [0], [1], [0, 0, 1, 1], [], []>} : vector<16x32xf32>, vector<32x64xf32>, vector<16x64xf32> -> vector<16x64xf32>
    %115 = vector.extract_strided_slice %111 {offsets = [0, 0], sizes = [1, 64], strides = [1, 1]} : vector<4x64xf32> to vector<1x64xf32>
    %116 = vector.broadcast %115 : vector<1x64xf32> to vector<16x64xf32>
    %117 = arith.addf %114, %116 : vector<16x64xf32>
    %cst_49 = arith.constant 5.000000e-01 : f32
    %118 = vector.broadcast %cst_49 : f32 to vector<16x64xf32>
    %119 = arith.mulf %117, %118 : vector<16x64xf32>
    %cst_50 = arith.constant 1.41421354 : f32
    %120 = vector.broadcast %cst_50 : f32 to vector<16x64xf32>
    %121 = arith.divf %117, %120 : vector<16x64xf32>
    %122 = math.erf %121 : vector<16x64xf32>
    %cst_51 = arith.constant 1.000000e+00 : f32
    %123 = vector.broadcast %cst_51 : f32 to vector<16x64xf32>
    %124 = arith.addf %123, %122 : vector<16x64xf32>
    %125 = arith.mulf %119, %124 : vector<16x64xf32>
    %126 = vector.extract_strided_slice %111 {offsets = [1, 0], sizes = [1, 64], strides = [1, 1]} : vector<4x64xf32> to vector<1x64xf32>
    %127 = vector.extract_strided_slice %111 {offsets = [2, 0], sizes = [1, 64], strides = [1, 1]} : vector<4x64xf32> to vector<1x64xf32>
    %cst_52 = arith.constant dense<0.000000e+00> : vector<16xf32>
    %128 = vector.multi_reduction <add>, %125, %cst_52 [1] : vector<16x64xf32> to vector<16xf32>
    %129 = vector.shape_cast %128 : vector<16xf32> to vector<16x1xf32>
    %cst_53 = arith.constant 6.400000e+01 : f32
    %130 = vector.broadcast %cst_53 : f32 to vector<16x1xf32>
    %131 = arith.divf %129, %130 : vector<16x1xf32>
    %132 = vector.broadcast %131 : vector<16x1xf32> to vector<16x64xf32>
    %133 = arith.subf %125, %132 : vector<16x64xf32>
    %134 = arith.mulf %133, %133 : vector<16x64xf32>
    %cst_54 = arith.constant dense<0.000000e+00> : vector<16xf32>
    %135 = vector.multi_reduction <add>, %134, %cst_54 [1] : vector<16x64xf32> to vector<16xf32>
    %136 = vector.shape_cast %135 : vector<16xf32> to vector<16x1xf32>
    %cst_55 = arith.constant 6.400000e+01 : f32
    %137 = vector.broadcast %cst_55 : f32 to vector<16x1xf32>
    %138 = arith.divf %136, %137 : vector<16x1xf32>
    %139 = vector.broadcast %131 : vector<16x1xf32> to vector<16x64xf32>
    %140 = arith.subf %125, %139 : vector<16x64xf32>
    %141 = vector.broadcast %126 : vector<1x64xf32> to vector<16x64xf32>
    %142 = arith.mulf %141, %140 : vector<16x64xf32>
    %cst_56 = arith.constant 9.99999996E-13 : f32
    %143 = vector.broadcast %cst_56 : f32 to vector<16x1xf32>
    %144 = arith.addf %138, %143 : vector<16x1xf32>
    %145 = math.rsqrt %144 : vector<16x1xf32>
    %146 = vector.broadcast %145 : vector<16x1xf32> to vector<16x64xf32>
    %147 = arith.mulf %142, %146 : vector<16x64xf32>
    %148 = vector.broadcast %127 : vector<1x64xf32> to vector<16x64xf32>
    %149 = arith.addf %147, %148 : vector<16x64xf32>
    %cst_57 = arith.constant dense<0.000000e+00> : vector<16x16xf32>
    %150 = tpu.matmul %149, %113, %cst_57 {dimension_numbers = #tpu.dot_dimension_numbers<[1], [0], [0], [1], [0, 0, 1, 1], [], []>} : vector<16x64xf32>, vector<64x16xf32>, vector<16x16xf32> -> vector<16x16xf32>
    %151 = vector.extract_strided_slice %111 {offsets = [3, 0], sizes = [1, 16], strides = [1, 1]} : vector<4x64xf32> to vector<1x16xf32>
    %152 = vector.broadcast %151 : vector<1x16xf32> to vector<16x16xf32>
    %153 = arith.addf %150, %152 : vector<16x16xf32>
    %cst_58 = arith.constant dense<0.000000e+00> : vector<16x16xf32>
    %154 = tpu.matmul %107, %153, %cst_58 {dimension_numbers = #tpu.dot_dimension_numbers<[1], [1], [0], [0], [0, 0, 1, 0], [], []>} : vector<16x16xf32>, vector<16x16xf32>, vector<16x16xf32> -> vector<16x16xf32>
    %c0_59 = arith.constant 0 : index
    %c0_60 = arith.constant 0 : index
    %155 = vector.load %arg4[%c0_59, %c0_60] : memref<18x16xf32, #tpu.memory_space<vmem>>, vector<16x16xf32>
    tpu.vector_store %arg4[%c0_59, %c0_60], %154 {strides = array<i32>} : memref<18x16xf32, #tpu.memory_space<vmem>>, vector<16x16xf32>,
    %c16 = arith.constant 16 : index
    %c0_61 = arith.constant 0 : index
    %156 = vector.load %arg4[%c16, %c0_61] : memref<18x16xf32, #tpu.memory_space<vmem>>, vector<2x16xf32>
    tpu.vector_store %arg4[%c16, %c0_61], %59 {strides = array<i32>} : memref<18x16xf32, #tpu.memory_space<vmem>>, vector<2x16xf32>,
    return
  }
}

</mosaic_0001>

<llo_original>
// kernel: tpu_custom_call.1
$region0: #{tpu_custom_call.1}
  #allocation0 [shape = 'u32[]', space=smem, size = 0x4, offset = 0x4, fixed_abs, tag = 'smem constant byte address 0x4 - core index']
  #allocation1 [shape = 'u32[144,128]{1,0:T(1,128)}', space=vmem, size = 0x12000, scoped, tag = 'internal scratch']
  %s0 = inlined_call_operand.vmem [shape: f32[34,32], index: 0, kind: input, shape index: {}]
  %s1 = inlined_call_operand.vmem [shape: f32[3,32,64], index: 1, kind: input, shape index: {}]
  %s2 = inlined_call_operand.vmem [shape: f32[3,4,64], index: 2, kind: input, shape index: {}]
  %s3 = inlined_call_operand.vmem [shape: f32[3,64,16], index: 3, kind: input, shape index: {}]
  %s4 = inlined_call_operand.vmem [shape: f32[18,16], index: 4, kind: output, shape index: {}]
  %s5 = sld [smem:[#allocation0]]
  $region26: #{tpu_custom_call.1} parent=0
    _
  %s7 = ssub.s32 1, %s5
  %s8 = scalar_select 0, %s7, %s5
  // Predicated region
  $region2: #{tpu_custom_call.1} parent=0 // pred_check
    _
  $region3: #{tpu_custom_call.1} parent=0 // pred_check_branch
    %10 = sbr.rel (0) target = $region5
  $region4: #{tpu_custom_call.1} parent=0 // pred_region
    _
  $region5: #{tpu_custom_call.1} parent=0 // pred_fallthru
    _
  // Predicated region
  $region6: #{tpu_custom_call.1} parent=0 // pred_check
    _
  $region7: #{tpu_custom_call.1} parent=0 // pred_check_branch
    %12 = sbr.rel (0) target = $region9
  $region8: #{tpu_custom_call.1} parent=0 // pred_region
    _
  $region9: #{tpu_custom_call.1} parent=0 // pred_fallthru
    _
  // Predicated region
  $region10: #{tpu_custom_call.1} parent=0 // pred_check
    _
  $region11: #{tpu_custom_call.1} parent=0 // pred_check_branch
    %14 = sbr.rel (0) target = $region13
  $region12: #{tpu_custom_call.1} parent=0 // pred_region
    _
  $region13: #{tpu_custom_call.1} parent=0 // pred_fallthru
    _
  // Predicated region
  $region14: #{tpu_custom_call.1} parent=0 // pred_check
    _
  $region15: #{tpu_custom_call.1} parent=0 // pred_check_branch
    %16 = sbr.rel (0) target = $region17
  $region16: #{tpu_custom_call.1} parent=0 // pred_region
    _
  $region17: #{tpu_custom_call.1} parent=0 // pred_fallthru
    _
  %v17 = vld [vmem:[%s0] sm:$0xff]
  %v18 = vld [vmem:[%s0 + $0x8] sm:$0xff]
  %v19 = vld [vmem:[%s0 + $0x10] sm:$0xff]
  %v20 = vld [vmem:[%s0 + $0x18] sm:$0xff]
  %v21 = vld [vmem:[%s0 + $0x20] sm:$0x3]
  %v22 = vld [vmem:[%s1] sm:$0xff]
  %v23 = vld [vmem:[%s1 + $0x8] sm:$0xff]
  %v24 = vld [vmem:[%s1 + $0x10] sm:$0xff]
  %v25 = vld [vmem:[%s1 + $0x18] sm:$0xff]
  %v26 = vld [vmem:[%s2] sm:$0xf]
  %v27 = vld [vmem:[%s3] sm:$0xff]
  %v28 = vld [vmem:[%s3 + $0x8] sm:$0xff]
  %v29 = vld [vmem:[%s3 + $0x10] sm:$0xff]
  %v30 = vld [vmem:[%s3 + $0x18] sm:$0xff]
  %v31 = vld [vmem:[%s3 + $0x20] sm:$0xff]
  %v32 = vld [vmem:[%s3 + $0x28] sm:$0xff]
  %v33 = vld [vmem:[%s3 + $0x30] sm:$0xff]
  %v34 = vld [vmem:[%s3 + $0x38] sm:$0xff]
  %v35 = vlaneseq
  %v36 = vshrl.u32 %v35, 7
  %v37 = vsub.s32 0, %v36
  %v38 = vrot.slane %v26, %v37
  %vm39 = vcmask 261120
  %v41 = vsel %vm39, %v17, 0
  %43 = vmatprep.subr.mxu0 0.0
  %44 = vmatpush1.msra.mxu0 %v22
  %45 = vmatprep.subr.mxu0 0.0
  %46 = vmatpush1.msra.mxu0 %v23
  %47 = vmatprep.subr.mxu0 0.0
  %48 = vmatpush1.msra.mxu0 %v24
  %49 = vmatprep.subr.mxu0 0.0
  %50 = vmatpush1.msra.mxu0 %v25
  %51 = vmatprep.subr.mxu0 0.0
  %52 = vmatpush1.msra.mxu0 0.0
  %53 = vmatprep.subr.mxu0 0.0
  %54 = vmatpush1.msra.mxu0 0.0
  %55 = vmatprep.subr.mxu0 0.0
  %56 = vmatpush1.msra.mxu0 0.0
  %57 = vmatprep.subr.mxu0 0.0
  %58 = vmatpush1.msra.mxu0 0.0
  %59 = vmatprep.subr.mxu0 0.0
  %60 = vmatpush1.msra.mxu0 0.0
  %61 = vmatprep.subr.mxu0 0.0
  %62 = vmatpush1.msra.mxu0 0.0
  %63 = vmatprep.subr.mxu0 0.0
  %64 = vmatpush1.msra.mxu0 0.0
  %65 = vmatprep.subr.mxu0 0.0
  %66 = vmatpush1.msra.mxu0 0.0
  %67 = vmatprep.subr.mxu0 0.0
  %68 = vmatpush1.msra.mxu0 0.0
  %69 = vmatprep.subr.mxu0 0.0
  %70 = vmatpush1.msra.mxu0 0.0
  %71 = vmatprep.subr.mxu0 0.0
  %72 = vmatpush1.msra.mxu0 0.0
  %73 = vmatprep.subr.mxu0 0.0
  %74 = vmatpush1.msra.mxu0 0.0
  %75 = vmatprep.subr.mxu0 0.0
  %76 = vmatpush1.msra.mxu0 0.0
  %77 = vmatprep.subr.mxu0 0.0
  %78 = vmatpush1.msra.mxu0 0.0
  %79 = vmatprep.subr.mxu0 0.0
  %80 = vmatpush1.msra.mxu0 0.0
  %81 = vmatprep.subr.mxu0 0.0
  %82 = vmatpush1.msra.mxu0 0.0
  %83 = vmatprep.subr.mxu0 0.0
  %84 = vmatpush1.msra.mxu0 0.0
  %85 = vmatprep.subr.mxu0 0.0
  %86 = vmatpush1.msra.mxu0 0.0
  %87 = vmatprep.subr.mxu0 0.0
  %88 = vmatpush1.msra.mxu0 0.0
  %89 = vmatprep.subr.mxu0 0.0
  %90 = vmatpush1.msra.mxu0 0.0
  %91 = vmatprep.subr.mxu0 0.0
  %92 = vmatpush1.msra.mxu0 0.0
  %93 = vmatprep.subr.mxu0 0.0
  %94 = vmatpush1.msra.mxu0 0.0
  %95 = vmatprep.subr.mxu0 0.0
  %96 = vmatpush1.msra.mxu0 0.0
  %97 = vmatprep.subr.mxu0 0.0
  %98 = vmatpush1.msra.mxu0 0.0
  %99 = vmatprep.subr.mxu0 0.0
  %100 = vmatpush1.msra.mxu0 0.0
  %101 = vmatprep.subr.mxu0 0.0
  %102 = vmatpush1.msra.mxu0 0.0
  %103 = vmatprep.subr.mxu0 0.0
  %104 = vmatpush1.msra.mxu0 0.0
  %105 = vmatprep.subr.mxu0 0.0
  %106 = vmatpush1.msra.mxu0 0.0
  %107 = vmatprep.mubr.f32.mxu0 0.0
  %108 = vmatmul.mubr.f32.gmra.mrb[0].mxu0 %v41
  %v109 = vpop.f32.mrb[0].mxu0
  %v110 = vadd.f32 %v38, %v109
  %v111 = vpop.f32.mrb[0].mxu0
  %112 = vdwg.mxu0
  %v113 = vmul.f32 %v110, 0.5
  %v114 = vrcp.pop 1.4142135
  %v115 = vmul.f32 %v110, %v114
  %v116 = verf.f32.pop %v115
  %v117 = vadd.f32 %v116, 1.0
  %v118 = vmul.f32 %v113, %v117
  %vm119 = vcmask 517120
  %v120 = vsel %vm119, %v118, 0.0
  %121 = vadd.xlane.f32.xlu0 %v120
  %v122 = vpop.xlane.xlu0 %121
  %v123 = vrcp.pop 64.0
  %v124 = vmul.f32 %v122, %v123
  %v125 = vsub.f32 %v118, %v124
  %v126 = vmul.f32 %v125, %v125
  %v127 = vsel %vm119, %v126, 0.0
  %128 = vadd.xlane.f32.xlu0 %v127
  %v129 = vpop.xlane.xlu0 %128
  %v130 = vmul.f32 %v129, %v123
  %v131 = vlaneseq
  %v132 = vshrl.u32 %v131, 7
  %v133 = vsub.s32 1, %v132
  %v134 = vrot.slane %v26, %v133
  %v135 = vmul.f32 %v134, %v125
  %v136 = vadd.f32 %v130, 1e-12
  %v137 = vrsqrt.pop %v136
  %v138 = vmul.f32 %v135, %v137
  %v139 = vlaneseq
  %v140 = vshrl.u32 %v139, 7
  %v141 = vsub.s32 2, %v140
  %v142 = vrot.slane %v26, %v141
  %v143 = vadd.f32 %v138, %v142
  %v144 = vlaneseq
  %v145 = vshrl.u32 %v144, 7
  %v146 = vsub.s32 3, %v145
  %v147 = vrot.slane %v26, %v146
  %vm148 = vcmask 523264
  %v150 = vsel %vm148, %v143, 0
  %152 = vmatprep.subr.mxu0 0.0
  %153 = vmatpush1.msra.mxu0 %v27
  %154 = vmatprep.subr.mxu0 0.0
  %155 = vmatpush1.msra.mxu0 %v28
  %156 = vmatprep.subr.mxu0 0.0
  %157 = vmatpush1.msra.mxu0 %v29
  %158 = vmatprep.subr.mxu0 0.0
  %159 = vmatpush1.msra.mxu0 %v30
  %160 = vmatprep.subr.mxu0 0.0
  %161 = vmatpush1.msra.mxu0 %v31
  %162 = vmatprep.subr.mxu0 0.0
  %163 = vmatpush1.msra.mxu0 %v32
  %164 = vmatprep.subr.mxu0 0.0
  %165 = vmatpush1.msra.mxu0 %v33
  %166 = vmatprep.subr.mxu0 0.0
  %167 = vmatpush1.msra.mxu0 %v34
  %168 = vmatprep.subr.mxu0 0.0
  %169 = vmatpush1.msra.mxu0 0.0
  %170 = vmatprep.subr.mxu0 0.0
  %171 = vmatpush1.msra.mxu0 0.0
  %172 = vmatprep.subr.mxu0 0.0
  %173 = vmatpush1.msra.mxu0 0.0
  %174 = vmatprep.subr.mxu0 0.0
  %175 = vmatpush1.msra.mxu0 0.0
  %176 = vmatprep.subr.mxu0 0.0
  %177 = vmatpush1.msra.mxu0 0.0
  %178 = vmatprep.subr.mxu0 0.0
  %179 = vmatpush1.msra.mxu0 0.0
  %180 = vmatprep.subr.mxu0 0.0
  %181 = vmatpush1.msra.mxu0 0.0
  %182 = vmatprep.subr.mxu0 0.0
  %183 = vmatpush1.msra.mxu0 0.0
  %184 = vmatprep.subr.mxu0 0.0
  %185 = vmatpush1.msra.mxu0 0.0
  %186 = vmatprep.subr.mxu0 0.0
  %187 = vmatpush1.msra.mxu0 0.0
  %188 = vmatprep.subr.mxu0 0.0
  %189 = vmatpush1.msra.mxu0 0.0
  %190 = vmatprep.subr.mxu0 0.0
  %191 = vmatpush1.msra.mxu0 0.0
  %192 = vmatprep.subr.mxu0 0.0
  %193 = vmatpush1.msra.mxu0 0.0
  %194 = vmatprep.subr.mxu0 0.0
  %195 = vmatpush1.msra.mxu0 0.0
  %196 = vmatprep.subr.mxu0 0.0
  %197 = vmatpush1.msra.mxu0 0.0
  %198 = vmatprep.subr.mxu0 0.0
  %199 = vmatpush1.msra.mxu0 0.0
  %200 = vmatprep.subr.mxu0 0.0
  %201 = vmatpush1.msra.mxu0 0.0
  %202 = vmatprep.subr.mxu0 0.0
  %203 = vmatpush1.msra.mxu0 0.0
  %204 = vmatprep.subr.mxu0 0.0
  %205 = vmatpush1.msra.mxu0 0.0
  %206 = vmatprep.subr.mxu0 0.0
  %207 = vmatpush1.msra.mxu0 0.0
  %208 = vmatprep.subr.mxu0 0.0
  %209 = vmatpush1.msra.mxu0 0.0
  %210 = vmatprep.subr.mxu0 0.0
  %211 = vmatpush1.msra.mxu0 0.0
  %212 = vmatprep.subr.mxu0 0.0
  %213 = vmatpush1.msra.mxu0 0.0
  %214 = vmatprep.subr.mxu0 0.0
  %215 = vmatpush1.msra.mxu0 0.0
  %216 = vmatprep.mubr.f32.mxu0 0.0
  %217 = vmatmul.mubr.f32.gmra.mrb[0].mxu0 %v150
  %v218 = vpop.f32.mrb[0].mxu0
  %v219 = vadd.f32 %v147, %v218
  %v220 = vpop.f32.mrb[0].mxu0
  %221 = vdwg.mxu0
  %vm222 = vcmask 123904
  %v223 = vsel %vm222, %v219, -inf
  %224 = vmax.xlane.f32.xlu0 %v223
  %v225 = vpop.xlane.xlu0 %224
  %v226 = vsub.f32 %v219, %v225
  %v227 = vmul.f32 %v226, 1.442695
  %v228 = vpow.pop %v227
  %v229 = vsel %vm222, %v228, 0.0
  %230 = vadd.xlane.f32.xlu0 %v229
  %v231 = vpop.xlane.xlu0 %230
  %v232 = vrcp.pop %v231
  %v233 = vmul.f32 %v228, %v232
  %s234 = scalar_lea.vmem %s1, 32
  %v235 = vld [vmem:[%s234] sm:$0xff]
  %v236 = vld [vmem:[%s234 + $0x8] sm:$0xff]
  %v237 = vld [vmem:[%s234 + $0x10] sm:$0xff]
  %v238 = vld [vmem:[%s234 + $0x18] sm:$0xff]
  %s239 = scalar_lea.vmem %s2, 4
  %v240 = vld [vmem:[%s239] sm:$0xf]
  %s241 = scalar_lea.vmem %s3, 64
  %v242 = vld [vmem:[%s241] sm:$0xff]
  %v243 = vld [vmem:[%s241 + $0x8] sm:$0xff]
  %v244 = vld [vmem:[%s241 + $0x10] sm:$0xff]
  %v245 = vld [vmem:[%s241 + $0x18] sm:$0xff]
  %v246 = vld [vmem:[%s241 + $0x20] sm:$0xff]
  %v247 = vld [vmem:[%s241 + $0x28] sm:$0xff]
  %v248 = vld [vmem:[%s241 + $0x30] sm:$0xff]
  %v249 = vld [vmem:[%s241 + $0x38] sm:$0xff]
  %v250 = vlaneseq
  %v251 = vshrl.u32 %v250, 7
  %v252 = vsub.s32 0, %v251
  %v253 = vrot.slane %v240, %v252
  %vm256 = vcmask 1045504
  %v257 = vrot.slane %v17, 2
  %v258 = vrot.slane %v18, 2
  %v259 = vsel %vm256, %v257, %v258
  %v260 = vrot.slane %v19, 2
  %v261 = vsel %vm256, %v258, %v260
  %v262 = vsel %vm39, %v259, 0
  %v264 = vsel %vm39, %v261, 0
  %266 = vmatprep.subr.mxu0 0.0
  %267 = vmatpush1.msra.mxu0 %v235
  %268 = vmatprep.subr.mxu0 0.0
  %269 = vmatpush1.msra.mxu0 %v236
  %270 = vmatprep.subr.mxu0 0.0
  %271 = vmatpush1.msra.mxu0 %v237
  %272 = vmatprep.subr.mxu0 0.0
  %273 = vmatpush1.msra.mxu0 %v238
  %274 = vmatprep.subr.mxu0 0.0
  %275 = vmatpush1.msra.mxu0 0.0
  %276 = vmatprep.subr.mxu0 0.0
  %277 = vmatpush1.msra.mxu0 0.0
  %278 = vmatprep.subr.mxu0 0.0
  %279 = vmatpush1.msra.mxu0 0.0
  %280 = vmatprep.subr.mxu0 0.0
  %281 = vmatpush1.msra.mxu0 0.0
  %282 = vmatprep.subr.mxu0 0.0
  %283 = vmatpush1.msra.mxu0 0.0
  %284 = vmatprep.subr.mxu0 0.0
  %285 = vmatpush1.msra.mxu0 0.0
  %286 = vmatprep.subr.mxu0 0.0
  %287 = vmatpush1.msra.mxu0 0.0
  %288 = vmatprep.subr.mxu0 0.0
  %289 = vmatpush1.msra.mxu0 0.0
  %290 = vmatprep.subr.mxu0 0.0
  %291 = vmatpush1.msra.mxu0 0.0
  %292 = vmatprep.subr.mxu0 0.0
  %293 = vmatpush1.msra.mxu0 0.0
  %294 = vmatprep.subr.mxu0 0.0
  %295 = vmatpush1.msra.mxu0 0.0
  %296 = vmatprep.subr.mxu0 0.0
  %297 = vmatpush1.msra.mxu0 0.0
  %298 = vmatprep.subr.mxu0 0.0
  %299 = vmatpush1.msra.mxu0 0.0
  %300 = vmatprep.subr.mxu0 0.0
  %301 = vmatpush1.msra.mxu0 0.0
  %302 = vmatprep.subr.mxu0 0.0
  %303 = vmatpush1.msra.mxu0 0.0
  %304 = vmatprep.subr.mxu0 0.0
  %305 = vmatpush1.msra.mxu0 0.0
  %306 = vmatprep.subr.mxu0 0.0
  %307 = vmatpush1.msra.mxu0 0.0
  %308 = vmatprep.subr.mxu0 0.0
  %309 = vmatpush1.msra.mxu0 0.0
  %310 = vmatprep.subr.mxu0 0.0
  %311 = vmatpush1.msra.mxu0 0.0
  %312 = vmatprep.subr.mxu0 0.0
  %313 = vmatpush1.msra.mxu0 0.0
  %314 = vmatprep.subr.mxu0 0.0
  %315 = vmatpush1.msra.mxu0 0.0
  %316 = vmatprep.subr.mxu0 0.0
  %317 = vmatpush1.msra.mxu0 0.0
  %318 = vmatprep.subr.mxu0 0.0
  %319 = vmatpush1.msra.mxu0 0.0
  %320 = vmatprep.subr.mxu0 0.0
  %321 = vmatpush1.msra.mxu0 0.0
  %322 = vmatprep.subr.mxu0 0.0
  %323 = vmatpush1.msra.mxu0 0.0
  %324 = vmatprep.subr.mxu0 0.0
  %325 = vmatpush1.msra.mxu0 0.0
  %326 = vmatprep.subr.mxu0 0.0
  %327 = vmatpush1.msra.mxu0 0.0
  %328 = vmatprep.subr.mxu0 0.0
  %329 = vmatpush1.msra.mxu0 0.0
  %330 = vmatprep.mubr.f32.mxu0 0.0
  %331 = vmatmul.mubr.f32.gmra.mrb[0].mxu0 %v262
  %v332 = vpop.f32.mrb[0].mxu0
  %v333 = vadd.f32 %v253, %v332
  %v334 = vpop.f32.mrb[0].mxu0
  %335 = vmatprep.mubr.f32.mxu0 0.0
  %336 = vmatmul.mubr.f32.gmra.mrb[0].mxu0 %v264
  %v337 = vpop.f32.mrb[0].mxu0
  %v338 = vadd.f32 %v253, %v337
  %v339 = vpop.f32.mrb[0].mxu0
  %340 = vdwg.mxu0
  %v341 = vmul.f32 %v333, 0.5
  %v342 = vmul.f32 %v338, 0.5
  %v343 = vmul.f32 %v333, %v114
  %v344 = vmul.f32 %v338, %v114
  %v345 = verf.f32.pop %v343
  %v346 = verf.f32.pop %v344
  %v347 = vadd.f32 %v345, 1.0
  %v348 = vadd.f32 %v346, 1.0
  %v349 = vmul.f32 %v341, %v347
  %v350 = vmul.f32 %v342, %v348
  %v351 = vsel %vm148, %v349, 0.0
  %352 = vadd.xlane.f32.xlu0 %v351
  %v353 = vpop.xlane.xlu0 %352
  %v354 = vsel %vm148, %v350, 0.0
  %355 = vadd.xlane.f32.xlu0 %v354
  %v356 = vpop.xlane.xlu0 %355
  %v357 = vmul.f32 %v353, %v123
  %v358 = vmul.f32 %v356, %v123
  %v359 = vsub.f32 %v349, %v357
  %v360 = vsub.f32 %v350, %v358
  %v361 = vmul.f32 %v359, %v359
  %v362 = vmul.f32 %v360, %v360
  %v363 = vsel %vm148, %v361, 0.0
  %364 = vadd.xlane.f32.xlu0 %v363
  %v365 = vpop.xlane.xlu0 %364
  %v366 = vsel %vm148, %v362, 0.0
  %367 = vadd.xlane.f32.xlu0 %v366
  %v368 = vpop.xlane.xlu0 %367
  %v369 = vmul.f32 %v365, %v123
  %v370 = vmul.f32 %v368, %v123
  %v371 = vlaneseq
  %v372 = vshrl.u32 %v371, 7
  %v373 = vsub.s32 1, %v372
  %v374 = vrot.slane %v240, %v373
  %v375 = vmul.f32 %v374, %v359
  %v376 = vmul.f32 %v374, %v360
  %v377 = vadd.f32 %v369, 1e-12
  %v378 = vadd.f32 %v370, 1e-12
  %v379 = vrsqrt.pop %v377
  %v380 = vrsqrt.pop %v378
  %v381 = vmul.f32 %v375, %v379
  %v382 = vmul.f32 %v376, %v380
  %v383 = vlaneseq
  %v384 = vshrl.u32 %v383, 7
  %v385 = vsub.s32 2, %v384
  %v386 = vrot.slane %v240, %v385
  %v387 = vadd.f32 %v381, %v386
  %v388 = vadd.f32 %v382, %v386
  %v389 = vlaneseq
  %v390 = vshrl.u32 %v389, 7
  %v391 = vsub.s32 3, %v390
  %v392 = vrot.slane %v240, %v391
  %v394 = vsel %vm148, %v387, 0
  %v397 = vsel %vm148, %v388, 0
  %399 = vmatprep.subr.mxu0 0.0
  %400 = vmatpush1.msra.mxu0 %v242
  %401 = vmatprep.subr.mxu0 0.0
  %402 = vmatpush1.msra.mxu0 %v243
  %403 = vmatprep.subr.mxu0 0.0
  %404 = vmatpush1.msra.mxu0 %v244
  %405 = vmatprep.subr.mxu0 0.0
  %406 = vmatpush1.msra.mxu0 %v245
  %407 = vmatprep.subr.mxu0 0.0
  %408 = vmatpush1.msra.mxu0 %v246
  %409 = vmatprep.subr.mxu0 0.0
  %410 = vmatpush1.msra.mxu0 %v247
  %411 = vmatprep.subr.mxu0 0.0
  %412 = vmatpush1.msra.mxu0 %v248
  %413 = vmatprep.subr.mxu0 0.0
  %414 = vmatpush1.msra.mxu0 %v249
  %415 = vmatprep.subr.mxu0 0.0
  %416 = vmatpush1.msra.mxu0 0.0
  %417 = vmatprep.subr.mxu0 0.0
  %418 = vmatpush1.msra.mxu0 0.0
  %419 = vmatprep.subr.mxu0 0.0
  %420 = vmatpush1.msra.mxu0 0.0
  %421 = vmatprep.subr.mxu0 0.0
  %422 = vmatpush1.msra.mxu0 0.0
  %423 = vmatprep.subr.mxu0 0.0
  %424 = vmatpush1.msra.mxu0 0.0
  %425 = vmatprep.subr.mxu0 0.0
  %426 = vmatpush1.msra.mxu0 0.0
  %427 = vmatprep.subr.mxu0 0.0
  %428 = vmatpush1.msra.mxu0 0.0
  %429 = vmatprep.subr.mxu0 0.0
  %430 = vmatpush1.msra.mxu0 0.0
  %431 = vmatprep.subr.mxu0 0.0
  %432 = vmatpush1.msra.mxu0 0.0
  %433 = vmatprep.subr.mxu0 0.0
  %434 = vmatpush1.msra.mxu0 0.0
  %435 = vmatprep.subr.mxu0 0.0
  %436 = vmatpush1.msra.mxu0 0.0
  %437 = vmatprep.subr.mxu0 0.0
  %438 = vmatpush1.msra.mxu0 0.0
  %439 = vmatprep.subr.mxu0 0.0
  %440 = vmatpush1.msra.mxu0 0.0
  %441 = vmatprep.subr.mxu0 0.0
  %442 = vmatpush1.msra.mxu0 0.0
  %443 = vmatprep.subr.mxu0 0.0
  %444 = vmatpush1.msra.mxu0 0.0
  %445 = vmatprep.subr.mxu0 0.0
  %446 = vmatpush1.msra.mxu0 0.0
  %447 = vmatprep.subr.mxu0 0.0
  %448 = vmatpush1.msra.mxu0 0.0
  %449 = vmatprep.subr.mxu0 0.0
  %450 = vmatpush1.msra.mxu0 0.0
  %451 = vmatprep.subr.mxu0 0.0
  %452 = vmatpush1.msra.mxu0 0.0
  %453 = vmatprep.subr.mxu0 0.0
  %454 = vmatpush1.msra.mxu0 0.0
  %455 = vmatprep.subr.mxu0 0.0
  %456 = vmatpush1.msra.mxu0 0.0
  %457 = vmatprep.subr.mxu0 0.0
  %458 = vmatpush1.msra.mxu0 0.0
  %459 = vmatprep.subr.mxu0 0.0
  %460 = vmatpush1.msra.mxu0 0.0
  %461 = vmatprep.subr.mxu0 0.0
  %462 = vmatpush1.msra.mxu0 0.0
  %463 = vmatprep.mubr.f32.mxu0 0.0
  %464 = vmatmul.mubr.f32.gmra.mrb[0].mxu0 %v394
  %v465 = vpop.f32.mrb[0].mxu0
  %v466 = vadd.f32 %v392, %v465
  %v467 = vpop.f32.mrb[0].mxu0
  %468 = vmatprep.mubr.f32.mxu0 0.0
  %469 = vmatmul.mubr.f32.gmra.mrb[0].mxu0 %v397
  %v470 = vpop.f32.mrb[0].mxu0
  %v471 = vadd.f32 %v392, %v470
  %v472 = vpop.f32.mrb[0].mxu0
  %473 = vdwg.mxu0
  %v474 = vmul.f32 %v466, 0.25
  %v475 = vmul.f32 %v471, 0.25
  %s476 = scalar_lea.vmem %s1, 64
  %v477 = vld [vmem:[%s476] sm:$0xff]
  %v478 = vld [vmem:[%s476 + $0x8] sm:$0xff]
  %v479 = vld [vmem:[%s476 + $0x10] sm:$0xff]
  %v480 = vld [vmem:[%s476 + $0x18] sm:$0xff]
  %s481 = scalar_lea.vmem %s2, 8
  %v482 = vld [vmem:[%s481] sm:$0xf]
  %s483 = scalar_lea.vmem %s3, 128
  %v484 = vld [vmem:[%s483] sm:$0xff]
  %v485 = vld [vmem:[%s483 + $0x8] sm:$0xff]
  %v486 = vld [vmem:[%s483 + $0x10] sm:$0xff]
  %v487 = vld [vmem:[%s483 + $0x18] sm:$0xff]
  %v488 = vld [vmem:[%s483 + $0x20] sm:$0xff]
  %v489 = vld [vmem:[%s483 + $0x28] sm:$0xff]
  %v490 = vld [vmem:[%s483 + $0x30] sm:$0xff]
  %v491 = vld [vmem:[%s483 + $0x38] sm:$0xff]
  %v492 = vlaneseq
  %v493 = vshrl.u32 %v492, 7
  %v494 = vsub.s32 0, %v493
  %v495 = vrot.slane %v482, %v494
  %v498 = vrot.slane %v20, 2
  %v499 = vsel %vm256, %v260, %v498
  %v500 = vrot.slane %v21, 2
  %v501 = vsel %vm256, %v498, %v500
  %v502 = vsel %vm39, %v499, 0
  %v504 = vsel %vm39, %v501, 0
  %506 = vmatprep.subr.mxu0 0.0
  %507 = vmatpush1.msra.mxu0 %v477
  %508 = vmatprep.subr.mxu0 0.0
  %509 = vmatpush1.msra.mxu0 %v478
  %510 = vmatprep.subr.mxu0 0.0
  %511 = vmatpush1.msra.mxu0 %v479
  %512 = vmatprep.subr.mxu0 0.0
  %513 = vmatpush1.msra.mxu0 %v480
  %514 = vmatprep.subr.mxu0 0.0
  %515 = vmatpush1.msra.mxu0 0.0
  %516 = vmatprep.subr.mxu0 0.0
  %517 = vmatpush1.msra.mxu0 0.0
  %518 = vmatprep.subr.mxu0 0.0
  %519 = vmatpush1.msra.mxu0 0.0
  %520 = vmatprep.subr.mxu0 0.0
  %521 = vmatpush1.msra.mxu0 0.0
  %522 = vmatprep.subr.mxu0 0.0
  %523 = vmatpush1.msra.mxu0 0.0
  %524 = vmatprep.subr.mxu0 0.0
  %525 = vmatpush1.msra.mxu0 0.0
  %526 = vmatprep.subr.mxu0 0.0
  %527 = vmatpush1.msra.mxu0 0.0
  %528 = vmatprep.subr.mxu0 0.0
  %529 = vmatpush1.msra.mxu0 0.0
  %530 = vmatprep.subr.mxu0 0.0
  %531 = vmatpush1.msra.mxu0 0.0
  %532 = vmatprep.subr.mxu0 0.0
  %533 = vmatpush1.msra.mxu0 0.0
  %534 = vmatprep.subr.mxu0 0.0
  %535 = vmatpush1.msra.mxu0 0.0
  %536 = vmatprep.subr.mxu0 0.0
  %537 = vmatpush1.msra.mxu0 0.0
  %538 = vmatprep.subr.mxu0 0.0
  %539 = vmatpush1.msra.mxu0 0.0
  %540 = vmatprep.subr.mxu0 0.0
  %541 = vmatpush1.msra.mxu0 0.0
  %542 = vmatprep.subr.mxu0 0.0
  %543 = vmatpush1.msra.mxu0 0.0
  %544 = vmatprep.subr.mxu0 0.0
  %545 = vmatpush1.msra.mxu0 0.0
  %546 = vmatprep.subr.mxu0 0.0
  %547 = vmatpush1.msra.mxu0 0.0
  %548 = vmatprep.subr.mxu0 0.0
  %549 = vmatpush1.msra.mxu0 0.0
  %550 = vmatprep.subr.mxu0 0.0
  %551 = vmatpush1.msra.mxu0 0.0
  %552 = vmatprep.subr.mxu0 0.0
  %553 = vmatpush1.msra.mxu0 0.0
  %554 = vmatprep.subr.mxu0 0.0
  %555 = vmatpush1.msra.mxu0 0.0
  %556 = vmatprep.subr.mxu0 0.0
  %557 = vmatpush1.msra.mxu0 0.0
  %558 = vmatprep.subr.mxu0 0.0
  %559 = vmatpush1.msra.mxu0 0.0
  %560 = vmatprep.subr.mxu0 0.0
  %561 = vmatpush1.msra.mxu0 0.0
  %562 = vmatprep.subr.mxu0 0.0
  %563 = vmatpush1.msra.mxu0 0.0
  %564 = vmatprep.subr.mxu0 0.0
  %565 = vmatpush1.msra.mxu0 0.0
  %566 = vmatprep.subr.mxu0 0.0
  %567 = vmatpush1.msra.mxu0 0.0
  %568 = vmatprep.subr.mxu0 0.0
  %569 = vmatpush1.msra.mxu0 0.0
  %570 = vmatprep.mubr.f32.mxu0 0.0
  %571 = vmatmul.mubr.f32.gmra.mrb[0].mxu0 %v502
  %v572 = vpop.f32.mrb[0].mxu0
  %v573 = vadd.f32 %v495, %v572
  %v574 = vpop.f32.mrb[0].mxu0
  %575 = vmatprep.mubr.f32.mxu0 0.0
  %576 = vmatmul.mubr.f32.gmra.mrb[0].mxu0 %v504
  %v577 = vpop.f32.mrb[0].mxu0
  %v578 = vadd.f32 %v495, %v577
  %v579 = vpop.f32.mrb[0].mxu0
  %580 = vdwg.mxu0
  %v581 = vmul.f32 %v573, 0.5
  %v582 = vmul.f32 %v578, 0.5
  %v583 = vmul.f32 %v573, %v114
  %v584 = vmul.f32 %v578, %v114
  %v585 = verf.f32.pop %v583
  %v586 = verf.f32.pop %v584
  %v587 = vadd.f32 %v585, 1.0
  %v588 = vadd.f32 %v586, 1.0
  %v589 = vmul.f32 %v581, %v587
  %v590 = vmul.f32 %v582, %v588
  %v591 = vsel %vm148, %v589, 0.0
  %592 = vadd.xlane.f32.xlu0 %v591
  %v593 = vpop.xlane.xlu0 %592
  %v594 = vsel %vm148, %v590, 0.0
  %595 = vadd.xlane.f32.xlu0 %v594
  %v596 = vpop.xlane.xlu0 %595
  %v597 = vmul.f32 %v593, %v123
  %v598 = vmul.f32 %v596, %v123
  %v599 = vsub.f32 %v589, %v597
  %v600 = vsub.f32 %v590, %v598
  %v601 = vmul.f32 %v599, %v599
  %v602 = vmul.f32 %v600, %v600
  %v603 = vsel %vm148, %v601, 0.0
  %604 = vadd.xlane.f32.xlu0 %v603
  %v605 = vpop.xlane.xlu0 %604
  %v606 = vsel %vm148, %v602, 0.0
  %607 = vadd.xlane.f32.xlu0 %v606
  %v608 = vpop.xlane.xlu0 %607
  %v609 = vmul.f32 %v605, %v123
  %v610 = vmul.f32 %v608, %v123
  %v611 = vlaneseq
  %v612 = vshrl.u32 %v611, 7
  %v613 = vsub.s32 1, %v612
  %v614 = vrot.slane %v482, %v613
  %v615 = vmul.f32 %v614, %v599
  %v616 = vmul.f32 %v614, %v600
  %v617 = vadd.f32 %v609, 1e-12
  %v618 = vadd.f32 %v610, 1e-12
  %v619 = vrsqrt.pop %v617
  %v620 = vrsqrt.pop %v618
  %v621 = vmul.f32 %v615, %v619
  %v622 = vmul.f32 %v616, %v620
  %v623 = vlaneseq
  %v624 = vshrl.u32 %v623, 7
  %v625 = vsub.s32 2, %v624
  %v626 = vrot.slane %v482, %v625
  %v627 = vadd.f32 %v621, %v626
  %v628 = vadd.f32 %v622, %v626
  %v629 = vlaneseq
  %v630 = vshrl.u32 %v629, 7
  %v631 = vsub.s32 3, %v630
  %v632 = vrot.slane %v482, %v631
  %v634 = vsel %vm148, %v627, 0
  %v637 = vsel %vm148, %v628, 0
  %639 = vmatprep.subr.mxu0 0.0
  %640 = vmatpush1.msra.mxu0 %v484
  %641 = vmatprep.subr.mxu0 0.0
  %642 = vmatpush1.msra.mxu0 %v485
  %643 = vmatprep.subr.mxu0 0.0
  %644 = vmatpush1.msra.mxu0 %v486
  %645 = vmatprep.subr.mxu0 0.0
  %646 = vmatpush1.msra.mxu0 %v487
  %647 = vmatprep.subr.mxu0 0.0
  %648 = vmatpush1.msra.mxu0 %v488
  %649 = vmatprep.subr.mxu0 0.0
  %650 = vmatpush1.msra.mxu0 %v489
  %651 = vmatprep.subr.mxu0 0.0
  %652 = vmatpush1.msra.mxu0 %v490
  %653 = vmatprep.subr.mxu0 0.0
  %654 = vmatpush1.msra.mxu0 %v491
  %655 = vmatprep.subr.mxu0 0.0
  %656 = vmatpush1.msra.mxu0 0.0
  %657 = vmatprep.subr.mxu0 0.0
  %658 = vmatpush1.msra.mxu0 0.0
  %659 = vmatprep.subr.mxu0 0.0
  %660 = vmatpush1.msra.mxu0 0.0
  %661 = vmatprep.subr.mxu0 0.0
  %662 = vmatpush1.msra.mxu0 0.0
  %663 = vmatprep.subr.mxu0 0.0
  %664 = vmatpush1.msra.mxu0 0.0
  %665 = vmatprep.subr.mxu0 0.0
  %666 = vmatpush1.msra.mxu0 0.0
  %667 = vmatprep.subr.mxu0 0.0
  %668 = vmatpush1.msra.mxu0 0.0
  %669 = vmatprep.subr.mxu0 0.0
  %670 = vmatpush1.msra.mxu0 0.0
  %671 = vmatprep.subr.mxu0 0.0
  %672 = vmatpush1.msra.mxu0 0.0
  %673 = vmatprep.subr.mxu0 0.0
  %674 = vmatpush1.msra.mxu0 0.0
  %675 = vmatprep.subr.mxu0 0.0
  %676 = vmatpush1.msra.mxu0 0.0
  %677 = vmatprep.subr.mxu0 0.0
  %678 = vmatpush1.msra.mxu0 0.0
  %679 = vmatprep.subr.mxu0 0.0
  %680 = vmatpush1.msra.mxu0 0.0
  %681 = vmatprep.subr.mxu0 0.0
  %682 = vmatpush1.msra.mxu0 0.0
  %683 = vmatprep.subr.mxu0 0.0
  %684 = vmatpush1.msra.mxu0 0.0
  %685 = vmatprep.subr.mxu0 0.0
  %686 = vmatpush1.msra.mxu0 0.0
  %687 = vmatprep.subr.mxu0 0.0
  %688 = vmatpush1.msra.mxu0 0.0
  %689 = vmatprep.subr.mxu0 0.0
  %690 = vmatpush1.msra.mxu0 0.0
  %691 = vmatprep.subr.mxu0 0.0
  %692 = vmatpush1.msra.mxu0 0.0
  %693 = vmatprep.subr.mxu0 0.0
  %694 = vmatpush1.msra.mxu0 0.0
  %695 = vmatprep.subr.mxu0 0.0
  %696 = vmatpush1.msra.mxu0 0.0
  %697 = vmatprep.subr.mxu0 0.0
  %698 = vmatpush1.msra.mxu0 0.0
  %699 = vmatprep.subr.mxu0 0.0
  %700 = vmatpush1.msra.mxu0 0.0
  %701 = vmatprep.subr.mxu0 0.0
  %702 = vmatpush1.msra.mxu0 0.0
  %703 = vmatprep.mubr.f32.mxu0 0.0
  %704 = vmatmul.mubr.f32.gmra.mrb[0].mxu0 %v634
  %v705 = vpop.f32.mrb[0].mxu0
  %v706 = vadd.f32 %v632, %v705
  %v707 = vpop.f32.mrb[0].mxu0
  %708 = vmatprep.mubr.f32.mxu0 0.0
  %709 = vmatmul.mubr.f32.gmra.mrb[0].mxu0 %v637
  %v710 = vpop.f32.mrb[0].mxu0
  %v711 = vadd.f32 %v632, %v710
  %v712 = vpop.f32.mrb[0].mxu0
  %713 = vdwg.mxu0
  %vm714 = vcmask 130048
  %v716 = vsel %vm714, %v474, 0
  %v719 = vsel %vm714, %v475, 0
  %v722 = vsel %vm714, %v706, 0
  %v725 = vsel %vm714, %v711, 0
  %727 = vmatprep.subr.mxu0 0.0
  %728 = vmatpush1.xpose.msra.mxu0 %v722
  %729 = vmatprep.subr.mxu0 0.0
  %730 = vmatpush1.xpose.msra.mxu0 %v725
  %731 = vmatprep.subr.mxu0 0.0
  %732 = vmatpush1.xpose.msra.mxu0 0.0
  %733 = vmatprep.subr.mxu0 0.0
  %734 = vmatpush1.xpose.msra.mxu0 0.0
  %735 = vmatprep.subr.mxu0 0.0
  %736 = vmatpush1.xpose.msra.mxu0 0.0
  %737 = vmatprep.subr.mxu0 0.0
  %738 = vmatpush1.xpose.msra.mxu0 0.0
  %739 = vmatprep.subr.mxu0 0.0
  %740 = vmatpush1.xpose.msra.mxu0 0.0
  %741 = vmatprep.subr.mxu0 0.0
  %742 = vmatpush1.xpose.msra.mxu0 0.0
  %743 = vmatprep.subr.mxu0 0.0
  %744 = vmatpush1.xpose.msra.mxu0 0.0
  %745 = vmatprep.subr.mxu0 0.0
  %746 = vmatpush1.xpose.msra.mxu0 0.0
  %747 = vmatprep.subr.mxu0 0.0
  %748 = vmatpush1.xpose.msra.mxu0 0.0
  %749 = vmatprep.subr.mxu0 0.0
  %750 = vmatpush1.xpose.msra.mxu0 0.0
  %751 = vmatprep.subr.mxu0 0.0
  %752 = vmatpush1.xpose.msra.mxu0 0.0
  %753 = vmatprep.subr.mxu0 0.0
  %754 = vmatpush1.xpose.msra.mxu0 0.0
  %755 = vmatprep.subr.mxu0 0.0
  %756 = vmatpush1.xpose.msra.mxu0 0.0
  %757 = vmatprep.subr.mxu0 0.0
  %758 = vmatpush1.xpose.msra.mxu0 0.0
  %759 = vmatprep.subr.mxu0 0.0
  %760 = vmatpush1.xpose.msra.mxu0 0.0
  %761 = vmatprep.subr.mxu0 0.0
  %762 = vmatpush1.xpose.msra.mxu0 0.0
  %763 = vmatprep.subr.mxu0 0.0
  %764 = vmatpush1.xpose.msra.mxu0 0.0
  %765 = vmatprep.subr.mxu0 0.0
  %766 = vmatpush1.xpose.msra.mxu0 0.0
  %767 = vmatprep.subr.mxu0 0.0
  %768 = vmatpush1.xpose.msra.mxu0 0.0
  %769 = vmatprep.subr.mxu0 0.0
  %770 = vmatpush1.xpose.msra.mxu0 0.0
  %771 = vmatprep.subr.mxu0 0.0
  %772 = vmatpush1.xpose.msra.mxu0 0.0
  %773 = vmatprep.subr.mxu0 0.0
  %774 = vmatpush1.xpose.msra.mxu0 0.0
  %775 = vmatprep.subr.mxu0 0.0
  %776 = vmatpush1.xpose.msra.mxu0 0.0
  %777 = vmatprep.subr.mxu0 0.0
  %778 = vmatpush1.xpose.msra.mxu0 0.0
  %779 = vmatprep.subr.mxu0 0.0
  %780 = vmatpush1.xpose.msra.mxu0 0.0
  %781 = vmatprep.subr.mxu0 0.0
  %782 = vmatpush1.xpose.msra.mxu0 0.0
  %783 = vmatprep.subr.mxu0 0.0
  %784 = vmatpush1.xpose.msra.mxu0 0.0
  %785 = vmatprep.subr.mxu0 0.0
  %786 = vmatpush1.xpose.msra.mxu0 0.0
  %787 = vmatprep.subr.mxu0 0.0
  %788 = vmatpush1.xpose.msra.mxu0 0.0
  %789 = vmatprep.subr.mxu0 0.0
  %790 = vmatpush1.xpose.msra.mxu0 0.0
  %791 = vmatprep.mubr.f32.mxu0 0.0
  %792 = vmatmul.mubr.f32.gmra.mrb[0].mxu0 %v716
  %v793 = vpop.f32.mrb[0].mxu0
  %v794 = vadd.f32 0.0, %v793
  %v795 = vpop.f32.mrb[0].mxu0
  %796 = vmatprep.mubr.f32.mxu0 0.0
  %797 = vmatmul.mubr.f32.gmra.mrb[0].mxu0 %v719
  %v798 = vpop.f32.mrb[0].mxu0
  %v799 = vadd.f32 0.0, %v798
  %v800 = vpop.f32.mrb[0].mxu0
  %801 = vdwg.mxu0
  %802 = vst.msk [vmem:[%s4] sm:$0xff] %vm714, %v794
  %803 = vst.msk [vmem:[%s4 + $0x8] sm:$0xff] %vm714, %v799
  %804 = vst.msk [vmem:[%s4 + $0x10] sm:$0x3] %vm222, %v233
  // Predicated region
  $region18: #{tpu_custom_call.1} parent=0 // pred_check
    _
  $region19: #{tpu_custom_call.1} parent=0 // pred_check_branch
    %806 = sbr.rel (0) target = $region21
  $region20: #{tpu_custom_call.1} parent=0 // pred_region
    _
  $region21: #{tpu_custom_call.1} parent=0 // pred_fallthru
    _
  // Predicated region
  $region22: #{tpu_custom_call.1} parent=0 // pred_check
    _
  $region23: #{tpu_custom_call.1} parent=0 // pred_check_branch
    %808 = sbr.rel (0) target = $region25
  $region24: #{tpu_custom_call.1} parent=0 // pred_region
    _
  $region25: #{tpu_custom_call.1} parent=0 // pred_fallthru
    _

</llo_original>
